<compile_context>
chip_gen: v6e
topology: v6e:2x2x1
jax: 0.10.0
libtpu: 0.0.40
codegen_flags: <defaults>
</compile_context>

<pallas_src>
import math

import jax
import jax.numpy as jnp
from jax.experimental import pallas as pl
from jax.experimental.pallas import tpu as pltpu


def mha_kernel(q_ref, kv_ref, mb_ref, wq_ref, wkv_ref, wo_ref, b_ref,
               hsum_ref, hbcast_ref, o_ref):
    """One batch tile of multi-head attention, all heads lane-dense.

    q_ref     : (TB, E)      compute-dtype query rows
    kv_ref    : (TB*S, E)    compute-dtype key/value source rows (flattened)
    mb_ref    : (TB, S, 1)   f32 additive mask bias (already * -1e9)
    wq_ref    : (E, E)       Wq^T
    wkv_ref   : (E, 2E)      [Wk^T | Wv^T]
    wo_ref    : (E, E)       Wo^T
    b_ref     : (4, E)       packed f32 biases (bq, bk, bv, bo)
    hsum_ref  : (E, H)       block-diag ones * 1/sqrt(hd)  (grouped score reduce)
    hbcast_ref: (H, E)       block-diag ones               (prob broadcast)
    o_ref     : (TB, E)      f32 output rows
    """
    TB, E = q_ref.shape
    S = mb_ref.shape[1]
    H = hsum_ref.shape[1]
    wdt = wq_ref.dtype

    # --- projections: dense MXU GEMMs with f32 accumulation ------------------
    qp = jnp.dot(q_ref[...], wq_ref[...],
                 preferred_element_type=jnp.float32) + b_ref[0:1, :]        # (TB, E)
    kvp = jnp.dot(kv_ref[...], wkv_ref[...],
                  preferred_element_type=jnp.float32)                       # (TB*S, 2E)
    kp = kvp[:, :E] + b_ref[1:2, :]                                         # (TB*S, E)
    vp = kvp[:, E:] + b_ref[2:3, :]                                         # (TB*S, E)

    # --- all-heads scores: lane-dense VPU multiply + block-diag MXU reduce ---
    sk = qp[:, None, :] * kp.reshape(TB, S, E)                              # (TB, S, E)
    s = jnp.dot(sk.reshape(TB * S, E), hsum_ref[...],
                preferred_element_type=jnp.float32)                         # (TB*S, H)
    s3 = s.reshape(TB, S, H) + mb_ref[...]                                  # (TB, S, H)

    # --- softmax over the key axis (f32, max-subtracted) ---------------------
    m = jnp.max(s3, axis=1, keepdims=True)                                  # (TB, 1, H)
    e = jnp.exp(s3 - m)
    denom = jnp.sum(e, axis=1, keepdims=True)
    p = e * pl.reciprocal(denom, approx=True)                               # (TB, S, H)
    # TODO(synk): attention dropout (nn.Dropout) is identity in eval mode; omitted.

    # --- weighted value sum: broadcast probs back to E lanes, reduce over S --
    pf = jnp.dot(p.reshape(TB * S, H), hbcast_ref[...],
                 preferred_element_type=jnp.float32)                        # (TB*S, E)
    head_cat = jnp.sum((pf * vp).reshape(TB, S, E), axis=1)                 # (TB, E)

    # --- single full-K output projection --------------------------------------
    out = jnp.dot(head_cat.astype(wdt), wo_ref[...],
                  preferred_element_type=jnp.float32) + b_ref[3:4, :]       # (TB, E)
    o_ref[...] = out.astype(o_ref.dtype)


def _round_up(x, m):
    return ((x + m - 1) // m) * m


def _vmem_capacity_bytes():
    """Physical VMEM per TensorCore (64 MiB on v7x, 128 MiB on v5e/v6e)."""
    try:
        info = pltpu.get_tpu_info()
        cap = getattr(info, "vmem_capacity_bytes", None)
        if cap:
            return int(cap)
    except Exception:
        pass
    return 128 * 1024 * 1024


def _pick_block_b(requested, B, Sp, Ep, n_head, itemsize, vmem_limit):
    """Largest batch tile that fits the VMEM budget (amortizes grid-step cost)."""
    # Grid-invariant weights / tables (double-buffered by the pipeline).
    weight_bytes = 2 * ((2 * Ep * Ep + Ep * 2 * Ep) * itemsize
                        + (4 * Ep + 2 * n_head * Ep) * 4)
    # Per-batch-row footprint of one grid step: double-buffered q/kv/mask/out
    # blocks plus the main f32 temporaries (kvp, kp, vp, sk, pf, pf*vp).
    per_row = (2 * Sp * Ep * itemsize + 2 * Ep * itemsize
               + 2 * (Sp + Ep) * 4 + 6 * Sp * Ep * 4)
    budget = max(2 * 1024 * 1024, int(vmem_limit * 0.75) - weight_bytes)
    tb = min(requested, B, max(16, budget // per_row))
    if tb >= B:
        if B >= 64:
            # Keep grid >= 2 so both v7x TensorCores get work on the
            # "parallel" batch axis (harmless ~0.35us extra on 1-TC chips).
            return max(16, (((B + 1) // 2) // 16) * 16)
        return B
    return max(16, (tb // 16) * 16)


def multi_head_attention(q, k, params, mask=None, *, n_head,
                         block_b=256, compute_dtype=jnp.bfloat16):
    """q: (B, E), k(=v): (B, S, E), mask: (B, S) or None.  Returns (B, E) f32.

    block_b:       upper bound on the batch tile (256 fills the 256-wide
                   v6e/v7x MXU; 128 is already optimal on v5e).  The actual
                   tile is derived from a VMEM budget so a tile that fits
                   v6e's 128 MiB still shrinks on v7x's 64 MiB.
    compute_dtype: dtype of the MXU operands (q / k / weights).  bf16 is the
                   MXU-native default; accumulation, biases, mask and softmax
                   stay in f32.
    """
    B, E = q.shape
    S = k.shape[1]
    hidden_dim = E // n_head
    assert n_head * hidden_dim == E, "embed_dim must be divisible by n_head"

    wq, bq, wk, bk, wv, bv, wo, bo = params
    itemsize = jnp.dtype(compute_dtype).itemsize

    # Padded extents: E -> lane-dense multiple of 128 (unmasked full-lane output
    # stores, clean lane slice of the fused K|V GEMM); S -> sublane multiple of
    # 8 so the in-kernel (TB,S,E) <-> (TB*S,E) reshapes are layout-preserving.
    Ep = _round_up(E, 128)
    Sp = _round_up(S, 8)

    vmem_cap = _vmem_capacity_bytes()
    vmem_limit = min(96 * 1024 * 1024, (vmem_cap * 3) // 4)   # 48 MiB on v7x
    TB = _pick_block_b(block_b, B, Sp, Ep, n_head, itemsize, vmem_limit)
    Bp = _round_up(B, TB)

    # ---- weights: transpose, zero-pad to Ep, fuse K|V, cast to compute dtype --
    def pad2(w):  # (E, E) -> (Ep, Ep)
        return jnp.pad(w, ((0, Ep - E), (0, Ep - E)))

    wq_t = pad2(wq.T).astype(compute_dtype)
    wkv_t = jnp.concatenate([pad2(wk.T), pad2(wv.T)], axis=1).astype(compute_dtype)
    wo_t = pad2(wo.T).astype(compute_dtype)

    def pad1(b):
        return jnp.pad(b, (0, Ep - E))

    biases = jnp.stack([pad1(bq), pad1(bk), pad1(bv), pad1(bo)],
                       axis=0).astype(jnp.float32)                          # (4, Ep)

    # Block-diagonal head matrices: grouped score reduction (scale folded in)
    # and probability broadcast.  Padded embed columns belong to no head.
    col = jnp.arange(Ep)
    onehot = ((col[:, None] // hidden_dim) == jnp.arange(n_head)[None, :]) \
        & (col[:, None] < E)
    hsum = onehot.astype(jnp.float32) / math.sqrt(hidden_dim)               # (Ep, H)
    hbcast = onehot.T.astype(jnp.float32)                                   # (H, Ep)

    # ---- activations: cast in the wrapper, pad, flatten kv to (B*S, E) --------
    qx = jnp.pad(q.astype(compute_dtype), ((0, Bp - B), (0, Ep - E)))
    kx = jnp.pad(k.astype(compute_dtype),
                 ((0, Bp - B), (0, Sp - S), (0, Ep - E)))
    kv2 = kx.reshape(Bp * Sp, Ep)

    if mask is None:
        mask = jnp.zeros((B, S), jnp.float32)
    mask = mask.astype(jnp.float32)
    mask = jnp.pad(mask, ((0, 0), (0, Sp - S)), constant_values=1.0)   # padded keys masked
    mask = jnp.pad(mask, ((0, Bp - B), (0, 0)))
    mask_bias = (mask * (-1000000000.0))[:, :, None]                    # (Bp, Sp, 1)

    out = pl.pallas_call(
        mha_kernel,
        out_shape=jax.ShapeDtypeStruct((Bp, Ep), jnp.float32),
        grid_spec=pltpu.PrefetchScalarGridSpec(
            num_scalar_prefetch=0,
            grid=(Bp // TB,),
            in_specs=[
                pl.BlockSpec((TB, Ep), lambda b: (b, 0)),             # q
                pl.BlockSpec((TB * Sp, Ep), lambda b: (b, 0)),        # kv (flattened)
                pl.BlockSpec((TB, Sp, 1), lambda b: (b, 0, 0)),       # mask bias
                pl.BlockSpec((Ep, Ep), lambda b: (0, 0)),             # Wq^T
                pl.BlockSpec((Ep, 2 * Ep), lambda b: (0, 0)),         # [Wk^T | Wv^T]
                pl.BlockSpec((Ep, Ep), lambda b: (0, 0)),             # Wo^T
                pl.BlockSpec((4, Ep), lambda b: (0, 0)),              # packed biases
                pl.BlockSpec((Ep, n_head), lambda b: (0, 0)),         # head-sum ones
                pl.BlockSpec((n_head, Ep), lambda b: (0, 0)),         # head-broadcast ones
            ],
            out_specs=pl.BlockSpec((TB, Ep), lambda b: (b, 0)),
        ),
        compiler_params=pltpu.CompilerParams(
            dimension_semantics=("parallel",),
            vmem_limit_bytes=int(vmem_limit),
        ),
    )(qx, kv2, mask_bias, wq_t, wkv_t, wo_t, biases, hsum, hbcast)
    return out[:B, :E]


def reference_mha(q, k, params, mask, n_head):
    """Pure-JAX reference mirroring the PyTorch forward (eval mode)."""
    wq, bq, wk, bk, wv, bv, wo, bo = params
    B, E = q.shape
    S = k.shape[1]
    hd = E // n_head
    qp = (q @ wq.T + bq).reshape(B, 1, n_head, hd).transpose(0, 2, 1, 3)   # (B,H,1,hd)
    kp = (k @ wk.T + bk).reshape(B, S, n_head, hd).transpose(0, 2, 1, 3)   # (B,H,S,hd)
    vp = (k @ wv.T + bv).reshape(B, S, n_head, hd).transpose(0, 2, 1, 3)   # (B,H,S,hd)
    scores = jnp.einsum('bhqd,bhkd->bhqk', qp, kp) / math.sqrt(hd)         # (B,H,1,S)
    if mask is not None:
        scores = scores + mask.reshape(B, 1, 1, S) * (-1000000000.0)
    p = jax.nn.softmax(scores, axis=-1)
    out = jnp.einsum('bhqk,bhkd->bhqd', p, vp)                             # (B,H,1,hd)
    out = out.transpose(0, 2, 1, 3).reshape(B, E)
    return out @ wo.T + bo


if __name__ == "__main__":
    B, S, E, n_head = 2, 8, 32, 4   # hidden_dim = E // n_head = 8

    key = jax.random.PRNGKey(0)
    keys = jax.random.split(key, 14)

    # Deterministic synthetic parameters (4 nn.Linear(E, E) layers: W + b each).
    def mk_w(kk):
        return jax.random.normal(kk, (E, E), jnp.float32) * 0.05

    def mk_b(kk):
        return jax.random.normal(kk, (E,), jnp.float32) * 0.05

    params = (mk_w(keys[0]), mk_b(keys[1]),   # q projection
              mk_w(keys[2]), mk_b(keys[3]),   # k projection
              mk_w(keys[4]), mk_b(keys[5]),   # v projection
              mk_w(keys[6]), mk_b(keys[7]))   # output projection

    q = jax.random.normal(keys[8], (B, E), jnp.float32)
    k = jax.random.normal(keys[9], (B, S, E), jnp.float32)
    # 0/1 mask, last two key positions masked out.
    mask = jnp.zeros((B, S), jnp.float32).at[:, -2:].set(1.0)

    ref = reference_mha(q, k, params, mask, n_head)

    # 1) exact f32 compute path.
    out = multi_head_attention(q, k, params, mask=mask, n_head=n_head,
                               compute_dtype=jnp.float32)
    out = jax.block_until_ready(out)
    assert out.shape == (B, E)
    assert jnp.allclose(out, ref, atol=5e-3, rtol=5e-3), (
        f"f32 max abs err {jnp.max(jnp.abs(out - ref))}")

    # 2) default bf16 (MXU-native) path, f32 accumulation / softmax.
    out_bf = multi_head_attention(q, k, params, mask=mask, n_head=n_head)
    out_bf = jax.block_until_ready(out_bf)
    assert jnp.allclose(out_bf, ref, atol=5e-2, rtol=5e-2), (
        f"bf16 max abs err {jnp.max(jnp.abs(out_bf - ref))}")

    # 3) exercise batch tiling + padding (grid > 1, B not a tile multiple).
    B2 = 20
    q2 = jax.random.normal(keys[10], (B2, E), jnp.float32)
    k2 = jax.random.normal(keys[11], (B2, S, E), jnp.float32)
    mask2 = jnp.zeros((B2, S), jnp.float32).at[:, -1:].set(1.0)
    out2 = multi_head_attention(q2, k2, params, mask=mask2, n_head=n_head,
                                block_b=16)
    out2 = jax.block_until_ready(out2)
    ref2 = reference_mha(q2, k2, params, mask2, n_head)
    assert out2.shape == (B2, E)
    assert jnp.allclose(out2, ref2, atol=5e-2, rtol=5e-2), (
        f"tiled bf16 max abs err {jnp.max(jnp.abs(out2 - ref2))}")

    print("KERNEL_OK")
</pallas_src>

<mosaic_0001>
module attributes {stable_mosaic.version = 11 : i64} {
  func.func @mha_kernel(%arg0: i32, %arg1: memref<2x128xf32, #tpu.memory_space<vmem>>, %arg2: memref<16x128xf32, #tpu.memory_space<vmem>>, %arg3: memref<2x8x1xf32, #tpu.memory_space<vmem>>, %arg4: memref<128x128xf32, #tpu.memory_space<vmem>>, %arg5: memref<128x256xf32, #tpu.memory_space<vmem>>, %arg6: memref<128x128xf32, #tpu.memory_space<vmem>>, %arg7: memref<4x128xf32, #tpu.memory_space<vmem>>, %arg8: memref<128x4xf32, #tpu.memory_space<vmem>>, %arg9: memref<4x128xf32, #tpu.memory_space<vmem>>, %arg10: memref<2x128xf32, #tpu.memory_space<vmem>>) attributes {dimension_semantics = [#tpu.dimension_semantics<parallel>], iteration_bounds = array<i64: 1>, scalar_prefetch = 0 : i64, scratch_operands = 0 : i64, tpu.core_type = #tpu.core_type<tc>, window_params = [{transform_indices = @transform_0, window_bounds = array<i64: 2, 128>}, {transform_indices = @transform_1, window_bounds = array<i64: 16, 128>}, {transform_indices = @transform_2, window_bounds = array<i64: 2, 8, 1>}, {pipeline_mode = #tpu.pipeline_mode<synchronous>, transform_indices = @transform_3, window_bounds = array<i64: 128, 128>}, {pipeline_mode = #tpu.pipeline_mode<synchronous>, transform_indices = @transform_4, window_bounds = array<i64: 128, 256>}, {pipeline_mode = #tpu.pipeline_mode<synchronous>, transform_indices = @transform_5, window_bounds = array<i64: 128, 128>}, {pipeline_mode = #tpu.pipeline_mode<synchronous>, transform_indices = @transform_6, window_bounds = array<i64: 4, 128>}, {pipeline_mode = #tpu.pipeline_mode<synchronous>, transform_indices = @transform_7, window_bounds = array<i64: 128, 4>}, {pipeline_mode = #tpu.pipeline_mode<synchronous>, transform_indices = @transform_8, window_bounds = array<i64: 4, 128>}, {transform_indices = @transform_9, window_bounds = array<i64: 2, 128>}]} {
    %c0 = arith.constant 0 : index
    %c0_0 = arith.constant 0 : index
    %0 = vector.load %arg1[%c0, %c0_0] : memref<2x128xf32, #tpu.memory_space<vmem>>, vector<2x128xf32>
    %c0_1 = arith.constant 0 : index
    %c0_2 = arith.constant 0 : index
    %1 = vector.load %arg4[%c0_1, %c0_2] : memref<128x128xf32, #tpu.memory_space<vmem>>, vector<128x128xf32>
    %cst = arith.constant dense<0.000000e+00> : vector<2x128xf32>
    %2 = tpu.matmul %0, %1, %cst {dimension_numbers = #tpu.dot_dimension_numbers<[1], [0], [0], [1], [0, 0, 1, 1], [], []>} : vector<2x128xf32>, vector<128x128xf32>, vector<2x128xf32> -> vector<2x128xf32>
    %c0_3 = arith.constant 0 : index
    %c0_4 = arith.constant 0 : index
    %3 = vector.load %arg7[%c0_3, %c0_4] : memref<4x128xf32, #tpu.memory_space<vmem>>, vector<1x128xf32>
    %4 = vector.broadcast %3 : vector<1x128xf32> to vector<2x128xf32>
    %5 = arith.addf %2, %4 : vector<2x128xf32>
    %c0_5 = arith.constant 0 : index
    %c0_6 = arith.constant 0 : index
    %6 = vector.load %arg2[%c0_5, %c0_6] : memref<16x128xf32, #tpu.memory_space<vmem>>, vector<16x128xf32>
    %c0_7 = arith.constant 0 : index
    %c0_8 = arith.constant 0 : index
    %7 = vector.load %arg5[%c0_7, %c0_8] : memref<128x256xf32, #tpu.memory_space<vmem>>, vector<128x256xf32>
    %cst_9 = arith.constant dense<0.000000e+00> : vector<16x256xf32>
    %8 = tpu.matmul %6, %7, %cst_9 {dimension_numbers = #tpu.dot_dimension_numbers<[1], [0], [0], [1], [0, 0, 1, 1], [], []>} : vector<16x128xf32>, vector<128x256xf32>, vector<16x256xf32> -> vector<16x256xf32>
    %9 = vector.extract_strided_slice %8 {offsets = [0, 0], sizes = [16, 128], strides = [1, 1]} : vector<16x256xf32> to vector<16x128xf32>
    %c1 = arith.constant 1 : index
    %c0_10 = arith.constant 0 : index
    %10 = vector.load %arg7[%c1, %c0_10] : memref<4x128xf32, #tpu.memory_space<vmem>>, vector<1x128xf32>
    %11 = vector.broadcast %10 : vector<1x128xf32> to vector<16x128xf32>
    %12 = arith.addf %9, %11 : vector<16x128xf32>
    %13 = vector.extract_strided_slice %8 {offsets = [0, 128], sizes = [16, 128], strides = [1, 1]} : vector<16x256xf32> to vector<16x128xf32>
    %c2 = arith.constant 2 : index
    %c0_11 = arith.constant 0 : index
    %14 = vector.load %arg7[%c2, %c0_11] : memref<4x128xf32, #tpu.memory_space<vmem>>, vector<1x128xf32>
    %15 = vector.broadcast %14 : vector<1x128xf32> to vector<16x128xf32>
    %16 = arith.addf %13, %15 : vector<16x128xf32>
    %17 = vector.shape_cast %5 : vector<2x128xf32> to vector<2x1x128xf32>
    %18 = vector.shape_cast %12 : vector<16x128xf32> to vector<2x8x128xf32>
    %19 = vector.broadcast %17 : vector<2x1x128xf32> to vector<2x8x128xf32>
    %20 = arith.mulf %19, %18 : vector<2x8x128xf32>
    %21 = vector.shape_cast %20 : vector<2x8x128xf32> to vector<16x128xf32>
    %c0_12 = arith.constant 0 : index
    %c0_13 = arith.constant 0 : index
    %22 = vector.load %arg8[%c0_12, %c0_13] : memref<128x4xf32, #tpu.memory_space<vmem>>, vector<128x4xf32>
    %cst_14 = arith.constant dense<0.000000e+00> : vector<16x4xf32>
    %23 = tpu.matmul %21, %22, %cst_14 {dimension_numbers = #tpu.dot_dimension_numbers<[1], [0], [0], [1], [0, 0, 1, 1], [], []>} : vector<16x128xf32>, vector<128x4xf32>, vector<16x4xf32> -> vector<16x4xf32>
    %24 = vector.shape_cast %23 : vector<16x4xf32> to vector<2x8x4xf32>
    %c0_15 = arith.constant 0 : index
    %c0_16 = arith.constant 0 : index
    %c0_17 = arith.constant 0 : index
    %25 = vector.load %arg3[%c0_15, %c0_16, %c0_17] : memref<2x8x1xf32, #tpu.memory_space<vmem>>, vector<2x8x1xf32>
    %26 = vector.broadcast %25 : vector<2x8x1xf32> to vector<2x8x4xf32>
    %27 = arith.addf %24, %26 : vector<2x8x4xf32>
    %cst_18 = arith.constant dense<0xFF800000> : vector<2x4xf32>
    %28 = vector.multi_reduction <maximumf>, %27, %cst_18 [1] : vector<2x8x4xf32> to vector<2x4xf32>
    %29 = vector.shape_cast %28 : vector<2x4xf32> to vector<2x1x4xf32>
    %30 = vector.broadcast %29 : vector<2x1x4xf32> to vector<2x8x4xf32>
    %31 = arith.subf %27, %30 : vector<2x8x4xf32>
    %32 = math.exp %31 : vector<2x8x4xf32>
    %cst_19 = arith.constant dense<0.000000e+00> : vector<2x4xf32>
    %33 = vector.multi_reduction <add>, %32, %cst_19 [1] : vector<2x8x4xf32> to vector<2x4xf32>
    %34 = vector.shape_cast %33 : vector<2x4xf32> to vector<2x1x4xf32>
    %35 = tpu.reciprocal %34 {approx = true} : vector<2x1x4xf32> -> vector<2x1x4xf32>
    %36 = vector.broadcast %35 : vector<2x1x4xf32> to vector<2x8x4xf32>
    %37 = arith.mulf %32, %36 : vector<2x8x4xf32>
    %38 = vector.shape_cast %37 : vector<2x8x4xf32> to vector<16x4xf32>
    %c0_20 = arith.constant 0 : index
    %c0_21 = arith.constant 0 : index
    %39 = vector.load %arg9[%c0_20, %c0_21] : memref<4x128xf32, #tpu.memory_space<vmem>>, vector<4x128xf32>
    %cst_22 = arith.constant dense<0.000000e+00> : vector<16x128xf32>
    %40 = tpu.matmul %38, %39, %cst_22 {dimension_numbers = #tpu.dot_dimension_numbers<[1], [0], [0], [1], [0, 0, 1, 1], [], []>} : vector<16x4xf32>, vector<4x128xf32>, vector<16x128xf32> -> vector<16x128xf32>
    %41 = arith.mulf %40, %16 : vector<16x128xf32>
    %42 = vector.shape_cast %41 : vector<16x128xf32> to vector<2x8x128xf32>
    %cst_23 = arith.constant dense<0.000000e+00> : vector<2x128xf32>
    %43 = vector.multi_reduction <add>, %42, %cst_23 [1] : vector<2x8x128xf32> to vector<2x128xf32>
    %c0_24 = arith.constant 0 : index
    %c0_25 = arith.constant 0 : index
    %44 = vector.load %arg6[%c0_24, %c0_25] : memref<128x128xf32, #tpu.memory_space<vmem>>, vector<128x128xf32>
    %cst_26 = arith.constant dense<0.000000e+00> : vector<2x128xf32>
    %45 = tpu.matmul %43, %44, %cst_26 {dimension_numbers = #tpu.dot_dimension_numbers<[1], [0], [0], [1], [0, 0, 1, 1], [], []>} : vector<2x128xf32>, vector<128x128xf32>, vector<2x128xf32> -> vector<2x128xf32>
    %c3 = arith.constant 3 : index
    %c0_27 = arith.constant 0 : index
    %46 = vector.load %arg7[%c3, %c0_27] : memref<4x128xf32, #tpu.memory_space<vmem>>, vector<1x128xf32>
    %47 = vector.broadcast %46 : vector<1x128xf32> to vector<2x128xf32>
    %48 = arith.addf %45, %47 : vector<2x128xf32>
    %c0_28 = arith.constant 0 : index
    %c0_29 = arith.constant 0 : index
    %49 = vector.load %arg10[%c0_28, %c0_29] : memref<2x128xf32, #tpu.memory_space<vmem>>, vector<2x128xf32>
    tpu.vector_store %arg10[%c0_28, %c0_29], %48 {strides = array<i32>} : memref<2x128xf32, #tpu.memory_space<vmem>>, vector<2x128xf32>,
    return
  }
  func.func @transform_0(%arg0: i32) -> (i32, i32) {
    %c0_i32 = arith.constant 0 : i32
    %c0_i32_0 = arith.constant 0 : i32
    return %arg0, %c0_i32 : i32, i32
  }
  func.func @transform_1(%arg0: i32) -> (i32, i32) {
    %c0_i32 = arith.constant 0 : i32
    %c0_i32_0 = arith.constant 0 : i32
    return %arg0, %c0_i32 : i32, i32
  }
  func.func @transform_2(%arg0: i32) -> (i32, i32, i32) {
    %c0_i32 = arith.constant 0 : i32
    %c0_i32_0 = arith.constant 0 : i32
    %c0_i32_1 = arith.constant 0 : i32
    return %arg0, %c0_i32, %c0_i32_0 : i32, i32, i32
  }
  func.func @transform_3(%arg0: i32) -> (i32, i32) {
    %c0_i32 = arith.constant 0 : i32
    %c0_i32_0 = arith.constant 0 : i32
    %c0_i32_1 = arith.constant 0 : i32
    return %c0_i32, %c0_i32_0 : i32, i32
  }
  func.func @transform_4(%arg0: i32) -> (i32, i32) {
    %c0_i32 = arith.constant 0 : i32
    %c0_i32_0 = arith.constant 0 : i32
    %c0_i32_1 = arith.constant 0 : i32
    return %c0_i32, %c0_i32_0 : i32, i32
  }
  func.func @transform_5(%arg0: i32) -> (i32, i32) {
    %c0_i32 = arith.constant 0 : i32
    %c0_i32_0 = arith.constant 0 : i32
    %c0_i32_1 = arith.constant 0 : i32
    return %c0_i32, %c0_i32_0 : i32, i32
  }
  func.func @transform_6(%arg0: i32) -> (i32, i32) {
    %c0_i32 = arith.constant 0 : i32
    %c0_i32_0 = arith.constant 0 : i32
    %c0_i32_1 = arith.constant 0 : i32
    return %c0_i32, %c0_i32_0 : i32, i32
  }
  func.func @transform_7(%arg0: i32) -> (i32, i32) {
    %c0_i32 = arith.constant 0 : i32
    %c0_i32_0 = arith.constant 0 : i32
    %c0_i32_1 = arith.constant 0 : i32
    return %c0_i32, %c0_i32_0 : i32, i32
  }
  func.func @transform_8(%arg0: i32) -> (i32, i32) {
    %c0_i32 = arith.constant 0 : i32
    %c0_i32_0 = arith.constant 0 : i32
    %c0_i32_1 = arith.constant 0 : i32
    return %c0_i32, %c0_i32_0 : i32, i32
  }
  func.func @transform_9(%arg0: i32) -> (i32, i32) {
    %c0_i32 = arith.constant 0 : i32
    %c0_i32_0 = arith.constant 0 : i32
    return %arg0, %c0_i32 : i32, i32
  }
}

</mosaic_0001>

<llo_original>
// kernel: tpu_custom_call.1
$region0: #{tpu_custom_call.1}
  #allocation0 [shape = 'u32[]', space=smem, size = 0x4, offset = 0x4, fixed_abs, tag = 'smem constant byte address 0x4 - core index']
  #allocation1 [shape = 'u32[144,128]{1,0:T(1,128)}', space=vmem, size = 0x12000, scoped, tag = 'internal scratch']
  %s0 = inlined_call_operand.hbm [shape: f32[2,128], index: 0, kind: input, shape index: {}]
  %s1 = inlined_call_operand.vmem [shape: f32[16,128], index: 1, kind: input, shape index: {}]
  %s2 = inlined_call_operand.vmem [shape: f32[2,8,1], index: 2, kind: input, shape index: {}]
  %s3 = inlined_call_operand.vmem [shape: f32[128,128], index: 3, kind: input, shape index: {}]
  %s4 = inlined_call_operand.hbm [shape: f32[128,256], index: 4, kind: input, shape index: {}]
  %s5 = inlined_call_operand.hbm [shape: f32[128,128], index: 5, kind: input, shape index: {}]
  %s6 = inlined_call_operand.vmem [shape: f32[4,128], index: 6, kind: input, shape index: {}]
  %s7 = inlined_call_operand.vmem [shape: f32[128,4], index: 7, kind: input, shape index: {}]
  %s8 = inlined_call_operand.vmem [shape: f32[4,128], index: 8, kind: input, shape index: {}]
  %s9 = inlined_call_operand.hbm [shape: f32[2,128], index: 9, kind: output, shape index: {}]
  %s10 = sld [smem:[#allocation0]]
  $region58: #{tpu_custom_call.1} parent=0
    _
  %s12 = ssub.s32 1, %s10
  %s13 = scalar_select 0, %s12, %s10
  $region1: #{tpu_custom_call.1} parent=0
    #allocation2 [shape = 'u8[1024]{0}', space=vmem, size = 0x400, scoped, tag = 'input window, operand 0, single buffered']
    #allocation3 [shape = 's32[1]{0}', space=sflag, size = 0x4, scoped, tag = 'scoped memory for tpu_custom_call.1']
    #allocation4 [shape = 's32[1]{0}', space=sflag, size = 0x4, scoped, tag = 'scoped memory for tpu_custom_call.1']
    #allocation5 [shape = 'u8[131072]{0}', space=vmem, size = 0x20000, scoped, tag = 'input window, operand 4, single buffered']
    #allocation6 [shape = 's32[1]{0}', space=sflag, size = 0x4, scoped, tag = 'scoped memory for tpu_custom_call.1']
    #allocation7 [shape = 'u8[65536]{0}', space=vmem, size = 0x10000, scoped, tag = 'input window, operand 5, single buffered']
    #allocation8 [shape = 'u8[1024]{0}', space=vmem, size = 0x400, scoped, tag = 'output window, operand 0, single buffered']
    %14 = vsyncpa [#allocation3], 0
    %15 = vsyncpa [#allocation6], 0
    %16 = vsyncpa [#allocation4], 0
    // Predicated region
    $region2: #{tpu_custom_call.1} parent=1 // pred_check
      _
    $region3: #{tpu_custom_call.1} parent=1 // pred_check_branch
      %18 = sbr.rel (0) target = $region5
    $region4: #{tpu_custom_call.1} parent=1 // pred_region
      %s20 = ssub.s32 32, 32
      %21 = vsyncadd [#allocation3], %s20
      %s23 = sshll.u32 [#allocation2], 4
      %s24 = int_to_ptr.vmem [resolvable:$true] %s23
      %26 = dma.hbm_to_vmem [thread:$0]  %s0, 32, %s24, [#allocation3]
    $region5: #{tpu_custom_call.1} parent=1 // pred_fallthru
      _
    // Predicated region
    $region6: #{tpu_custom_call.1} parent=1 // pred_check
      _
    $region7: #{tpu_custom_call.1} parent=1 // pred_check_branch
      %28 = sbr.rel (0) target = $region9
    $region8: #{tpu_custom_call.1} parent=1 // pred_region
      _
    $region9: #{tpu_custom_call.1} parent=1 // pred_fallthru
      _
    // Predicated region
    $region10: #{tpu_custom_call.1} parent=1 // pred_check
      _
    $region11: #{tpu_custom_call.1} parent=1 // pred_check_branch
      %30 = sbr.rel (0) target = $region13
    $region12: #{tpu_custom_call.1} parent=1 // pred_region
      _
    $region13: #{tpu_custom_call.1} parent=1 // pred_fallthru
      _
    // Predicated region
    $region14: #{tpu_custom_call.1} parent=1 // pred_check
      _
    $region15: #{tpu_custom_call.1} parent=1 // pred_check_branch
      %32 = sbr.rel (0) target = $region17
    $region16: #{tpu_custom_call.1} parent=1 // pred_region
      _
    $region17: #{tpu_custom_call.1} parent=1 // pred_fallthru
      _
    // Predicated region
    $region18: #{tpu_custom_call.1} parent=1 // pred_check
      _
    $region19: #{tpu_custom_call.1} parent=1 // pred_check_branch
      %34 = sbr.rel (0) target = $region21
    $region20: #{tpu_custom_call.1} parent=1 // pred_region
      %s36 = ssub.s32 4096, 4096
      %37 = vsyncadd [#allocation6], %s36
      %s38 = sshll.u32 [#allocation5], 4
      %s39 = int_to_ptr.vmem [resolvable:$true] %s38
      %44 = dma.hbm_to_vmem [thread:$0]  %s4, 4096, %s39, [#allocation6], 256, 256, 16
    $region21: #{tpu_custom_call.1} parent=1 // pred_fallthru
      _
    // Predicated region
    $region22: #{tpu_custom_call.1} parent=1 // pred_check
      _
    $region23: #{tpu_custom_call.1} parent=1 // pred_check_branch
      %46 = sbr.rel (0) target = $region25
    $region24: #{tpu_custom_call.1} parent=1 // pred_region
      %s48 = ssub.s32 2048, 2048
      %49 = vsyncadd [#allocation6], %s48
      %s50 = sshll.u32 [#allocation7], 4
      %s51 = int_to_ptr.vmem [resolvable:$true] %s50
      %56 = dma.hbm_to_vmem [thread:$0]  %s5, 2048, %s51, [#allocation6], 128, 128, 8
    $region25: #{tpu_custom_call.1} parent=1 // pred_fallthru
      _
    // Predicated region
    $region26: #{tpu_custom_call.1} parent=1 // pred_check
      _
    $region27: #{tpu_custom_call.1} parent=1 // pred_check_branch
      %58 = sbr.rel (0) target = $region29
    $region28: #{tpu_custom_call.1} parent=1 // pred_region
      _
    $region29: #{tpu_custom_call.1} parent=1 // pred_fallthru
      _
    // Predicated region
    $region30: #{tpu_custom_call.1} parent=1 // pred_check
      _
    $region31: #{tpu_custom_call.1} parent=1 // pred_check_branch
      %60 = sbr.rel (0) target = $region33
    $region32: #{tpu_custom_call.1} parent=1 // pred_region
      _
    $region33: #{tpu_custom_call.1} parent=1 // pred_fallthru
      _
    // Predicated region
    $region34: #{tpu_custom_call.1} parent=1 // pred_check
      _
    $region35: #{tpu_custom_call.1} parent=1 // pred_check_branch
      %62 = sbr.rel (0) target = $region37
    $region36: #{tpu_custom_call.1} parent=1 // pred_region
      _
    $region37: #{tpu_custom_call.1} parent=1 // pred_fallthru
      _
    // Predicated region
    $region38: #{tpu_custom_call.1} parent=1 // pred_check
      _
    $region39: #{tpu_custom_call.1} parent=1 // pred_check_branch
      %64 = sbr.rel (0) target = $region41
    $region40: #{tpu_custom_call.1} parent=1 // pred_region
      %65 = dma.done [#allocation3], 32
    $region41: #{tpu_custom_call.1} parent=1 // pred_fallthru
      _
    // Predicated region
    $region42: #{tpu_custom_call.1} parent=1 // pred_check
      _
    $region43: #{tpu_custom_call.1} parent=1 // pred_check_branch
      %67 = sbr.rel (0) target = $region45
    $region44: #{tpu_custom_call.1} parent=1 // pred_region
      %68 = dma.done [#allocation6], 4096
    $region45: #{tpu_custom_call.1} parent=1 // pred_fallthru
      _
    // Predicated region
    $region46: #{tpu_custom_call.1} parent=1 // pred_check
      _
    $region47: #{tpu_custom_call.1} parent=1 // pred_check_branch
      %70 = sbr.rel (0) target = $region49
    $region48: #{tpu_custom_call.1} parent=1 // pred_region
      %71 = dma.done [#allocation6], 2048
    $region49: #{tpu_custom_call.1} parent=1 // pred_fallthru
      _
    %v72 = vld [vmem:[#allocation2] sm:$0x3]
    %v73 = vld [vmem:[%s3] sm:$0xff]
    %v74 = vld [vmem:[%s3 + $0x8] sm:$0xff]
    %v75 = vld [vmem:[%s3 + $0x10] sm:$0xff]
    %v76 = vld [vmem:[%s3 + $0x18] sm:$0xff]
    %v77 = vld [vmem:[%s3 + $0x20] sm:$0xff]
    %v78 = vld [vmem:[%s3 + $0x28] sm:$0xff]
    %v79 = vld [vmem:[%s3 + $0x30] sm:$0xff]
    %v80 = vld [vmem:[%s3 + $0x38] sm:$0xff]
    %v81 = vld [vmem:[%s3 + $0x40] sm:$0xff]
    %v82 = vld [vmem:[%s3 + $0x48] sm:$0xff]
    %v83 = vld [vmem:[%s3 + $0x50] sm:$0xff]
    %v84 = vld [vmem:[%s3 + $0x58] sm:$0xff]
    %v85 = vld [vmem:[%s3 + $0x60] sm:$0xff]
    %v86 = vld [vmem:[%s3 + $0x68] sm:$0xff]
    %v87 = vld [vmem:[%s3 + $0x70] sm:$0xff]
    %v88 = vld [vmem:[%s3 + $0x78] sm:$0xff]
    %v89 = vld [vmem:[%s6] sm:$0x1]
    %v90 = vlaneseq
    %v91 = vshrl.u32 %v90, 7
    %v92 = vsub.s32 0, %v91
    %v93 = vrot.slane %v89, %v92
    %94 = vmatprep.subr.mxu0 0.0
    %95 = vmatpush1.msra.mxu0 %v88
    %96 = vmatprep.subr.mxu0 0.0
    %97 = vmatpush1.msra.mxu0 %v87
    %98 = vmatprep.subr.mxu0 0.0
    %99 = vmatpush1.msra.mxu0 %v86
    %100 = vmatprep.subr.mxu0 0.0
    %101 = vmatpush1.msra.mxu0 %v85
    %102 = vmatprep.subr.mxu0 0.0
    %103 = vmatpush1.msra.mxu0 %v84
    %104 = vmatprep.subr.mxu0 0.0
    %105 = vmatpush1.msra.mxu0 %v83
    %106 = vmatprep.subr.mxu0 0.0
    %107 = vmatpush1.msra.mxu0 %v82
    %108 = vmatprep.subr.mxu0 0.0
    %109 = vmatpush1.msra.mxu0 %v81
    %110 = vmatprep.subr.mxu0 0.0
    %111 = vmatpush1.msra.mxu0 %v80
    %112 = vmatprep.subr.mxu0 0.0
    %113 = vmatpush1.msra.mxu0 %v79
    %114 = vmatprep.subr.mxu0 0.0
    %115 = vmatpush1.msra.mxu0 %v78
    %116 = vmatprep.subr.mxu0 0.0
    %117 = vmatpush1.msra.mxu0 %v77
    %118 = vmatprep.subr.mxu0 0.0
    %119 = vmatpush1.msra.mxu0 %v76
    %120 = vmatprep.subr.mxu0 0.0
    %121 = vmatpush1.msra.mxu0 %v75
    %122 = vmatprep.subr.mxu0 0.0
    %123 = vmatpush1.msra.mxu0 %v74
    %124 = vmatprep.subr.mxu0 0.0
    %125 = vmatpush1.msra.mxu0 %v73
    %126 = vmatprep.subr.mxu0 0.0
    %127 = vmatpush2.msra.mxu0 0.0
    %128 = vmatprep.subr.mxu0 0.0
    %129 = vmatpush2.msra.mxu0 0.0
    %130 = vmatprep.subr.mxu0 0.0
    %131 = vmatpush2.msra.mxu0 0.0
    %132 = vmatprep.subr.mxu0 0.0
    %133 = vmatpush2.msra.mxu0 0.0
    %134 = vmatprep.subr.mxu0 0.0
    %135 = vmatpush2.msra.mxu0 0.0
    %136 = vmatprep.subr.mxu0 0.0
    %137 = vmatpush2.msra.mxu0 0.0
    %138 = vmatprep.subr.mxu0 0.0
    %139 = vmatpush2.msra.mxu0 0.0
    %140 = vmatprep.subr.mxu0 0.0
    %141 = vmatpush2.msra.mxu0 0.0
    %142 = vmatprep.subr.mxu0 0.0
    %143 = vmatpush2.msra.mxu0 0.0
    %144 = vmatprep.subr.mxu0 0.0
    %145 = vmatpush2.msra.mxu0 0.0
    %146 = vmatprep.subr.mxu0 0.0
    %147 = vmatpush2.msra.mxu0 0.0
    %148 = vmatprep.subr.mxu0 0.0
    %149 = vmatpush2.msra.mxu0 0.0
    %150 = vmatprep.subr.mxu0 0.0
    %151 = vmatpush2.msra.mxu0 0.0
    %152 = vmatprep.subr.mxu0 0.0
    %153 = vmatpush2.msra.mxu0 0.0
    %154 = vmatprep.subr.mxu0 0.0
    %155 = vmatpush2.msra.mxu0 0.0
    %156 = vmatprep.subr.mxu0 0.0
    %157 = vmatpush2.msra.mxu0 0.0
    %158 = vmatprep.mubr.f32.mxu0 0.0
    %159 = vmatmul.mubr.f32.gmra.mxu0 %v72
    %v160 = vpop.f32.mrf.mxu0
    %v161 = vadd.f32 %v93, %v160
    %v162 = vpop.f32.mrf.mxu0
    %163 = vdwg.mxu0
    %v164 = vld [vmem:[%s1] sm:$0xff]
    %v165 = vld [vmem:[%s1 + $0x8] sm:$0xff]
    %v166 = vld [vmem:[#allocation5] sm:$0xff]
    %v167 = vld [vmem:[#allocation5 + $0x8] sm:$0xff]
    %v168 = vld [vmem:[#allocation5 + $0x10] sm:$0xff]
    %v169 = vld [vmem:[#allocation5 + $0x18] sm:$0xff]
    %v170 = vld [vmem:[#allocation5 + $0x20] sm:$0xff]
    %v171 = vld [vmem:[#allocation5 + $0x28] sm:$0xff]
    %v172 = vld [vmem:[#allocation5 + $0x30] sm:$0xff]
    %v173 = vld [vmem:[#allocation5 + $0x38] sm:$0xff]
    %v174 = vld [vmem:[#allocation5 + $0x40] sm:$0xff]
    %v175 = vld [vmem:[#allocation5 + $0x48] sm:$0xff]
    %v176 = vld [vmem:[#allocation5 + $0x50] sm:$0xff]
    %v177 = vld [vmem:[#allocation5 + $0x58] sm:$0xff]
    %v178 = vld [vmem:[#allocation5 + $0x60] sm:$0xff]
    %v179 = vld [vmem:[#allocation5 + $0x68] sm:$0xff]
    %v180 = vld [vmem:[#allocation5 + $0x70] sm:$0xff]
    %v181 = vld [vmem:[#allocation5 + $0x78] sm:$0xff]
    %v182 = vld [vmem:[#allocation5 + $0x80] sm:$0xff]
    %v183 = vld [vmem:[#allocation5 + $0x88] sm:$0xff]
    %v184 = vld [vmem:[#allocation5 + $0x90] sm:$0xff]
    %v185 = vld [vmem:[#allocation5 + $0x98] sm:$0xff]
    %v186 = vld [vmem:[#allocation5 + $0xa0] sm:$0xff]
    %v187 = vld [vmem:[#allocation5 + $0xa8] sm:$0xff]
    %v188 = vld [vmem:[#allocation5 + $0xb0] sm:$0xff]
    %v189 = vld [vmem:[#allocation5 + $0xb8] sm:$0xff]
    %v190 = vld [vmem:[#allocation5 + $0xc0] sm:$0xff]
    %v191 = vld [vmem:[#allocation5 + $0xc8] sm:$0xff]
    %v192 = vld [vmem:[#allocation5 + $0xd0] sm:$0xff]
    %v193 = vld [vmem:[#allocation5 + $0xd8] sm:$0xff]
    %v194 = vld [vmem:[#allocation5 + $0xe0] sm:$0xff]
    %v195 = vld [vmem:[#allocation5 + $0xe8] sm:$0xff]
    %v196 = vld [vmem:[#allocation5 + $0xf0] sm:$0xff]
    %v197 = vld [vmem:[#allocation5 + $0xf8] sm:$0xff]
    %198 = vmatprep.subr.mxu0 %v197
    %199 = vmatpush1.msra.mxu0 %v196
    %200 = vmatprep.subr.mxu0 %v195
    %201 = vmatpush1.msra.mxu0 %v194
    %202 = vmatprep.subr.mxu0 %v193
    %203 = vmatpush1.msra.mxu0 %v192
    %204 = vmatprep.subr.mxu0 %v191
    %205 = vmatpush1.msra.mxu0 %v190
    %206 = vmatprep.subr.mxu0 %v189
    %207 = vmatpush1.msra.mxu0 %v188
    %208 = vmatprep.subr.mxu0 %v187
    %209 = vmatpush1.msra.mxu0 %v186
    %210 = vmatprep.subr.mxu0 %v185
    %211 = vmatpush1.msra.mxu0 %v184
    %212 = vmatprep.subr.mxu0 %v183
    %213 = vmatpush1.msra.mxu0 %v182
    %214 = vmatprep.subr.mxu0 %v181
    %215 = vmatpush1.msra.mxu0 %v180
    %216 = vmatprep.subr.mxu0 %v179
    %217 = vmatpush1.msra.mxu0 %v178
    %218 = vmatprep.subr.mxu0 %v177
    %219 = vmatpush1.msra.mxu0 %v176
    %220 = vmatprep.subr.mxu0 %v175
    %221 = vmatpush1.msra.mxu0 %v174
    %222 = vmatprep.subr.mxu0 %v173
    %223 = vmatpush1.msra.mxu0 %v172
    %224 = vmatprep.subr.mxu0 %v171
    %225 = vmatpush1.msra.mxu0 %v170
    %226 = vmatprep.subr.mxu0 %v169
    %227 = vmatpush1.msra.mxu0 %v168
    %228 = vmatprep.subr.mxu0 %v167
    %229 = vmatpush1.msra.mxu0 %v166
    %230 = vmatprep.subr.mxu0 0.0
    %231 = vmatpush2.msra.mxu0 0.0
    %232 = vmatprep.subr.mxu0 0.0
    %233 = vmatpush2.msra.mxu0 0.0
    %234 = vmatprep.subr.mxu0 0.0
    %235 = vmatpush2.msra.mxu0 0.0
    %236 = vmatprep.subr.mxu0 0.0
    %237 = vmatpush2.msra.mxu0 0.0
    %238 = vmatprep.subr.mxu0 0.0
    %239 = vmatpush2.msra.mxu0 0.0
    %240 = vmatprep.subr.mxu0 0.0
    %241 = vmatpush2.msra.mxu0 0.0
    %242 = vmatprep.subr.mxu0 0.0
    %243 = vmatpush2.msra.mxu0 0.0
    %244 = vmatprep.subr.mxu0 0.0
    %245 = vmatpush2.msra.mxu0 0.0
    %246 = vmatprep.subr.mxu0 0.0
    %247 = vmatpush2.msra.mxu0 0.0
    %248 = vmatprep.subr.mxu0 0.0
    %249 = vmatpush2.msra.mxu0 0.0
    %250 = vmatprep.subr.mxu0 0.0
    %251 = vmatpush2.msra.mxu0 0.0
    %252 = vmatprep.subr.mxu0 0.0
    %253 = vmatpush2.msra.mxu0 0.0
    %254 = vmatprep.subr.mxu0 0.0
    %255 = vmatpush2.msra.mxu0 0.0
    %256 = vmatprep.subr.mxu0 0.0
    %257 = vmatpush2.msra.mxu0 0.0
    %258 = vmatprep.subr.mxu0 0.0
    %259 = vmatpush2.msra.mxu0 0.0
    %260 = vmatprep.subr.mxu0 0.0
    %261 = vmatpush2.msra.mxu0 0.0
    %262 = vmatprep.mubr.f32.mxu0 0.0
    %263 = vmatmul.mubr.f32.gmra.mxu0 %v164
    %v264 = vpop.f32.mrf.mxu0
    %v265 = vadd.f32 0.0, %v264
    %v266 = vpop.f32.mrf.mxu0
    %v267 = vadd.f32 0.0, %v266
    %268 = vmatprep.mubr.f32.mxu0 0.0
    %269 = vmatmul.mubr.f32.gmra.mxu0 %v165
    %v270 = vpop.f32.mrf.mxu0
    %v271 = vadd.f32 0.0, %v270
    %v272 = vpop.f32.mrf.mxu0
    %v273 = vadd.f32 0.0, %v272
    %274 = vdwg.mxu0
    %v275 = vld [vmem:[%s6 + $0x1] sm:$0x1]
    %v276 = vlaneseq
    %v277 = vshrl.u32 %v276, 7
    %v278 = vsub.s32 0, %v277
    %v279 = vrot.slane %v275, %v278
    %v280 = vadd.f32 %v265, %v279
    %v281 = vadd.f32 %v271, %v279
    %v282 = vld [vmem:[%s6 + $0x2] sm:$0x1]
    %v283 = vlaneseq
    %v284 = vshrl.u32 %v283, 7
    %v285 = vsub.s32 0, %v284
    %v286 = vrot.slane %v282, %v285
    %v287 = vadd.f32 %v267, %v286
    %v288 = vadd.f32 %v273, %v286
    %v291 = vunpack.c.l.s4 1966171168
    %v292 = vunpack.c.0.s8 %v291
    %v293 = vlaneseq
    %v294 = vshrl.u32 %v293, 7
    %v295 = vsub.s32 %v292, %v294
    %v296 = vrot.slane %v161, %v295
    %v297 = vcombine.high %v296, %v296
    %v299 = vunpack.c.l.s4 1966171168
    %v300 = vunpack.c.0.s8 %v299
    %v301 = vlaneseq
    %v302 = vshrl.u32 %v301, 7
    %v303 = vsub.s32 %v300, %v302
    %v304 = vrot.slane %v296, %v303
    %v306 = vunpack.c.l.s4 1966171168
    %v307 = vunpack.c.0.s8 %v306
    %v308 = vlaneseq
    %v309 = vshrl.u32 %v308, 7
    %v310 = vsub.s32 %v307, %v309
    %v311 = vrot.slane %v297, %v310
    %v312 = vlaneseq
    %v313 = vshrl.u32 %v312, 7
    %v314 = vsub.s32 0, %v313
    %v315 = vrot.slane %v304, %v314
    %v316 = vlaneseq
    %v317 = vshrl.u32 %v316, 7
    %v318 = vsub.s32 0, %v317
    %v319 = vrot.slane %v311, %v318
    %v322 = vmul.f32 %v315, %v280
    %v323 = vmul.f32 %v319, %v281
    %v324 = vld [vmem:[%s7] sm:$0xff]
    %v325 = vld [vmem:[%s7 + $0x8] sm:$0xff]
    %v326 = vld [vmem:[%s7 + $0x10] sm:$0xff]
    %v327 = vld [vmem:[%s7 + $0x18] sm:$0xff]
    %v328 = vld [vmem:[%s7 + $0x20] sm:$0xff]
    %v329 = vld [vmem:[%s7 + $0x28] sm:$0xff]
    %v330 = vld [vmem:[%s7 + $0x30] sm:$0xff]
    %v331 = vld [vmem:[%s7 + $0x38] sm:$0xff]
    %v332 = vld [vmem:[%s7 + $0x40] sm:$0xff]
    %v333 = vld [vmem:[%s7 + $0x48] sm:$0xff]
    %v334 = vld [vmem:[%s7 + $0x50] sm:$0xff]
    %v335 = vld [vmem:[%s7 + $0x58] sm:$0xff]
    %v336 = vld [vmem:[%s7 + $0x60] sm:$0xff]
    %v337 = vld [vmem:[%s7 + $0x68] sm:$0xff]
    %v338 = vld [vmem:[%s7 + $0x70] sm:$0xff]
    %v339 = vld [vmem:[%s7 + $0x78] sm:$0xff]
    %340 = vmatprep.subr.mxu0 0.0
    %341 = vmatpush1.msra.mxu0 %v339
    %342 = vmatprep.subr.mxu0 0.0
    %343 = vmatpush1.msra.mxu0 %v338
    %344 = vmatprep.subr.mxu0 0.0
    %345 = vmatpush1.msra.mxu0 %v337
    %346 = vmatprep.subr.mxu0 0.0
    %347 = vmatpush1.msra.mxu0 %v336
    %348 = vmatprep.subr.mxu0 0.0
    %349 = vmatpush1.msra.mxu0 %v335
    %350 = vmatprep.subr.mxu0 0.0
    %351 = vmatpush1.msra.mxu0 %v334
    %352 = vmatprep.subr.mxu0 0.0
    %353 = vmatpush1.msra.mxu0 %v333
    %354 = vmatprep.subr.mxu0 0.0
    %355 = vmatpush1.msra.mxu0 %v332
    %356 = vmatprep.subr.mxu0 0.0
    %357 = vmatpush1.msra.mxu0 %v331
    %358 = vmatprep.subr.mxu0 0.0
    %359 = vmatpush1.msra.mxu0 %v330
    %360 = vmatprep.subr.mxu0 0.0
    %361 = vmatpush1.msra.mxu0 %v329
    %362 = vmatprep.subr.mxu0 0.0
    %363 = vmatpush1.msra.mxu0 %v328
    %364 = vmatprep.subr.mxu0 0.0
    %365 = vmatpush1.msra.mxu0 %v327
    %366 = vmatprep.subr.mxu0 0.0
    %367 = vmatpush1.msra.mxu0 %v326
    %368 = vmatprep.subr.mxu0 0.0
    %369 = vmatpush1.msra.mxu0 %v325
    %370 = vmatprep.subr.mxu0 0.0
    %371 = vmatpush1.msra.mxu0 %v324
    %372 = vmatprep.subr.mxu0 0.0
    %373 = vmatpush2.msra.mxu0 0.0
    %374 = vmatprep.subr.mxu0 0.0
    %375 = vmatpush2.msra.mxu0 0.0
    %376 = vmatprep.subr.mxu0 0.0
    %377 = vmatpush2.msra.mxu0 0.0
    %378 = vmatprep.subr.mxu0 0.0
    %379 = vmatpush2.msra.mxu0 0.0
    %380 = vmatprep.subr.mxu0 0.0
    %381 = vmatpush2.msra.mxu0 0.0
    %382 = vmatprep.subr.mxu0 0.0
    %383 = vmatpush2.msra.mxu0 0.0
    %384 = vmatprep.subr.mxu0 0.0
    %385 = vmatpush2.msra.mxu0 0.0
    %386 = vmatprep.subr.mxu0 0.0
    %387 = vmatpush2.msra.mxu0 0.0
    %388 = vmatprep.subr.mxu0 0.0
    %389 = vmatpush2.msra.mxu0 0.0
    %390 = vmatprep.subr.mxu0 0.0
    %391 = vmatpush2.msra.mxu0 0.0
    %392 = vmatprep.subr.mxu0 0.0
    %393 = vmatpush2.msra.mxu0 0.0
    %394 = vmatprep.subr.mxu0 0.0
    %395 = vmatpush2.msra.mxu0 0.0
    %396 = vmatprep.subr.mxu0 0.0
    %397 = vmatpush2.msra.mxu0 0.0
    %398 = vmatprep.subr.mxu0 0.0
    %399 = vmatpush2.msra.mxu0 0.0
    %400 = vmatprep.subr.mxu0 0.0
    %401 = vmatpush2.msra.mxu0 0.0
    %402 = vmatprep.subr.mxu0 0.0
    %403 = vmatpush2.msra.mxu0 0.0
    %404 = vmatprep.mubr.f32.mxu0 0.0
    %405 = vmatmul.mubr.f32.gmra.mxu0 %v322
    %v406 = vpop.f32.mrf.mxu0
    %v407 = vadd.f32 0.0, %v406
    %v408 = vpop.f32.mrf.mxu0
    %409 = vmatprep.mubr.f32.mxu0 0.0
    %410 = vmatmul.mubr.f32.gmra.mxu0 %v323
    %v411 = vpop.f32.mrf.mxu0
    %v412 = vadd.f32 0.0, %v411
    %v413 = vpop.f32.mrf.mxu0
    %414 = vdwg.mxu0
    %v415 = vld [vmem:[%s2] sm:$0xff]
    %v416 = vld [vmem:[%s2 + $0x8] sm:$0xff]
    %418 = vset.pattern.permute.xlu0 0
    %419 = vperm.xlu0 %418, %v415
    %v420 = vpop.permute.xlu0 %419
    %423 = vset.pattern.permute.xlu0 0
    %424 = vperm.xlu0 %423, %v416
    %v425 = vpop.permute.xlu0 %424
    %v427 = vadd.f32 %v407, %v420
    %v428 = vadd.f32 %v412, %v425
    %vm429 = vcmask 31744
    %v430 = vsel %vm429, %v427, -inf
    %v431 = vrot.slane %v430, 4
    %v432 = vmax.f32 %v430, %v431
    %v433 = vrot.slane %v432, 2
    %v434 = vmax.f32 %v432, %v433
    %v435 = vrot.slane %v434, 1
    %v436 = vmax.f32 %v434, %v435
    %v437 = vsel %vm429, %v428, -inf
    %v438 = vrot.slane %v437, 4
    %v439 = vmax.f32 %v437, %v438
    %v440 = vrot.slane %v439, 2
    %v441 = vmax.f32 %v439, %v440
    %v442 = vrot.slane %v441, 1
    %v443 = vmax.f32 %v441, %v442
    %v444 = vsub.f32 %v427, %v436
    %v445 = vsub.f32 %v428, %v443
    %v446 = vmul.f32 %v444, 1.442695
    %v447 = vpow.pop %v446
    %v448 = vmul.f32 %v445, 1.442695
    %v449 = vpow.pop %v448
    %v450 = vsel %vm429, %v447, 0.0
    %v451 = vrot.slane %v450, 4
    %v452 = vadd.f32 %v450, %v451
    %v453 = vrot.slane %v452, 2
    %v454 = vadd.f32 %v452, %v453
    %v455 = vrot.slane %v454, 1
    %v456 = vadd.f32 %v454, %v455
    %v457 = vsel %vm429, %v449, 0.0
    %v458 = vrot.slane %v457, 4
    %v459 = vadd.f32 %v457, %v458
    %v460 = vrot.slane %v459, 2
    %v461 = vadd.f32 %v459, %v460
    %v462 = vrot.slane %v461, 1
    %v463 = vadd.f32 %v461, %v462
    %v464 = vrcp.pop %v456
    %v465 = vrcp.pop %v463
    %v466 = vmul.f32 %v447, %v464
    %v467 = vmul.f32 %v449, %v465
    %v468 = vld [vmem:[%s8] sm:$0xf]
    %v470 = vsel %vm429, %v466, 0
    %v473 = vsel %vm429, %v467, 0
    %vm475 = vcmask 1043456
    %v477 = vsel %vm475, %v468, 0
    %479 = vmatprep.subr.mxu0 0.0
    %480 = vmatpush1.msra.mxu0 0.0
    %481 = vmatprep.subr.mxu0 0.0
    %482 = vmatpush1.msra.mxu0 0.0
    %483 = vmatprep.subr.mxu0 0.0
    %484 = vmatpush1.msra.mxu0 0.0
    %485 = vmatprep.subr.mxu0 0.0
    %486 = vmatpush1.msra.mxu0 0.0
    %487 = vmatprep.subr.mxu0 0.0
    %488 = vmatpush1.msra.mxu0 0.0
    %489 = vmatprep.subr.mxu0 0.0
    %490 = vmatpush1.msra.mxu0 0.0
    %491 = vmatprep.subr.mxu0 0.0
    %492 = vmatpush1.msra.mxu0 0.0
    %493 = vmatprep.subr.mxu0 0.0
    %494 = vmatpush1.msra.mxu0 0.0
    %495 = vmatprep.subr.mxu0 0.0
    %496 = vmatpush1.msra.mxu0 0.0
    %497 = vmatprep.subr.mxu0 0.0
    %498 = vmatpush1.msra.mxu0 0.0
    %499 = vmatprep.subr.mxu0 0.0
    %500 = vmatpush1.msra.mxu0 0.0
    %501 = vmatprep.subr.mxu0 0.0
    %502 = vmatpush1.msra.mxu0 0.0
    %503 = vmatprep.subr.mxu0 0.0
    %504 = vmatpush1.msra.mxu0 0.0
    %505 = vmatprep.subr.mxu0 0.0
    %506 = vmatpush1.msra.mxu0 0.0
    %507 = vmatprep.subr.mxu0 0.0
    %508 = vmatpush1.msra.mxu0 0.0
    %509 = vmatprep.subr.mxu0 0.0
    %510 = vmatpush1.msra.mxu0 %v477
    %511 = vmatprep.subr.mxu0 0.0
    %512 = vmatpush2.msra.mxu0 0.0
    %513 = vmatprep.subr.mxu0 0.0
    %514 = vmatpush2.msra.mxu0 0.0
    %515 = vmatprep.subr.mxu0 0.0
    %516 = vmatpush2.msra.mxu0 0.0
    %517 = vmatprep.subr.mxu0 0.0
    %518 = vmatpush2.msra.mxu0 0.0
    %519 = vmatprep.subr.mxu0 0.0
    %520 = vmatpush2.msra.mxu0 0.0
    %521 = vmatprep.subr.mxu0 0.0
    %522 = vmatpush2.msra.mxu0 0.0
    %523 = vmatprep.subr.mxu0 0.0
    %524 = vmatpush2.msra.mxu0 0.0
    %525 = vmatprep.subr.mxu0 0.0
    %526 = vmatpush2.msra.mxu0 0.0
    %527 = vmatprep.subr.mxu0 0.0
    %528 = vmatpush2.msra.mxu0 0.0
    %529 = vmatprep.subr.mxu0 0.0
    %530 = vmatpush2.msra.mxu0 0.0
    %531 = vmatprep.subr.mxu0 0.0
    %532 = vmatpush2.msra.mxu0 0.0
    %533 = vmatprep.subr.mxu0 0.0
    %534 = vmatpush2.msra.mxu0 0.0
    %535 = vmatprep.subr.mxu0 0.0
    %536 = vmatpush2.msra.mxu0 0.0
    %537 = vmatprep.subr.mxu0 0.0
    %538 = vmatpush2.msra.mxu0 0.0
    %539 = vmatprep.subr.mxu0 0.0
    %540 = vmatpush2.msra.mxu0 0.0
    %541 = vmatprep.subr.mxu0 0.0
    %542 = vmatpush2.msra.mxu0 0.0
    %543 = vmatprep.mubr.f32.mxu0 0.0
    %544 = vmatmul.mubr.f32.gmra.mxu0 %v470
    %v545 = vpop.f32.mrf.mxu0
    %v546 = vadd.f32 0.0, %v545
    %v547 = vpop.f32.mrf.mxu0
    %548 = vmatprep.mubr.f32.mxu0 0.0
    %549 = vmatmul.mubr.f32.gmra.mxu0 %v473
    %v550 = vpop.f32.mrf.mxu0
    %v551 = vadd.f32 0.0, %v550
    %v552 = vpop.f32.mrf.mxu0
    %553 = vdwg.mxu0
    %v554 = vmul.f32 %v546, %v287
    %v555 = vmul.f32 %v551, %v288
    %v556 = vrot.slane %v554, 4
    %v557 = vadd.f32 %v554, %v556
    %v558 = vrot.slane %v557, 2
    %v559 = vadd.f32 %v557, %v558
    %v560 = vrot.slane %v559, 1
    %v561 = vadd.f32 %v559, %v560
    %v562 = vrot.slane %v555, 4
    %v563 = vadd.f32 %v555, %v562
    %v564 = vrot.slane %v563, 2
    %v565 = vadd.f32 %v563, %v564
    %v566 = vrot.slane %v565, 1
    %v567 = vadd.f32 %v565, %v566
    %v568 = vld [vmem:[#allocation7] sm:$0xff]
    %v569 = vld [vmem:[#allocation7 + $0x8] sm:$0xff]
    %v570 = vld [vmem:[#allocation7 + $0x10] sm:$0xff]
    %v571 = vld [vmem:[#allocation7 + $0x18] sm:$0xff]
    %v572 = vld [vmem:[#allocation7 + $0x20] sm:$0xff]
    %v573 = vld [vmem:[#allocation7 + $0x28] sm:$0xff]
    %v574 = vld [vmem:[#allocation7 + $0x30] sm:$0xff]
    %v575 = vld [vmem:[#allocation7 + $0x38] sm:$0xff]
    %v576 = vld [vmem:[#allocation7 + $0x40] sm:$0xff]
    %v577 = vld [vmem:[#allocation7 + $0x48] sm:$0xff]
    %v578 = vld [vmem:[#allocation7 + $0x50] sm:$0xff]
    %v579 = vld [vmem:[#allocation7 + $0x58] sm:$0xff]
    %v580 = vld [vmem:[#allocation7 + $0x60] sm:$0xff]
    %v581 = vld [vmem:[#allocation7 + $0x68] sm:$0xff]
    %v582 = vld [vmem:[#allocation7 + $0x70] sm:$0xff]
    %v583 = vld [vmem:[#allocation7 + $0x78] sm:$0xff]
    %v584 = vld [vmem:[%s6 + $0x3] sm:$0x1]
    %v585 = vlaneseq
    %v586 = vshrl.u32 %v585, 7
    %v587 = vsub.s32 0, %v586
    %v588 = vrot.slane %v584, %v587
    %vm591 = vcmask 1041409
    %v592 = vsel %vm591, %v567, %v561
    %594 = vmatprep.subr.mxu0 0.0
    %595 = vmatpush1.msra.mxu0 %v583
    %596 = vmatprep.subr.mxu0 0.0
    %597 = vmatpush1.msra.mxu0 %v582
    %598 = vmatprep.subr.mxu0 0.0
    %599 = vmatpush1.msra.mxu0 %v581
    %600 = vmatprep.subr.mxu0 0.0
    %601 = vmatpush1.msra.mxu0 %v580
    %602 = vmatprep.subr.mxu0 0.0
    %603 = vmatpush1.msra.mxu0 %v579
    %604 = vmatprep.subr.mxu0 0.0
    %605 = vmatpush1.msra.mxu0 %v578
    %606 = vmatprep.subr.mxu0 0.0
    %607 = vmatpush1.msra.mxu0 %v577
    %608 = vmatprep.subr.mxu0 0.0
    %609 = vmatpush1.msra.mxu0 %v576
    %610 = vmatprep.subr.mxu0 0.0
    %611 = vmatpush1.msra.mxu0 %v575
    %612 = vmatprep.subr.mxu0 0.0
    %613 = vmatpush1.msra.mxu0 %v574
    %614 = vmatprep.subr.mxu0 0.0
    %615 = vmatpush1.msra.mxu0 %v573
    %616 = vmatprep.subr.mxu0 0.0
    %617 = vmatpush1.msra.mxu0 %v572
    %618 = vmatprep.subr.mxu0 0.0
    %619 = vmatpush1.msra.mxu0 %v571
    %620 = vmatprep.subr.mxu0 0.0
    %621 = vmatpush1.msra.mxu0 %v570
    %622 = vmatprep.subr.mxu0 0.0
    %623 = vmatpush1.msra.mxu0 %v569
    %624 = vmatprep.subr.mxu0 0.0
    %625 = vmatpush1.msra.mxu0 %v568
    %626 = vmatprep.subr.mxu0 0.0
    %627 = vmatpush2.msra.mxu0 0.0
    %628 = vmatprep.subr.mxu0 0.0
    %629 = vmatpush2.msra.mxu0 0.0
    %630 = vmatprep.subr.mxu0 0.0
    %631 = vmatpush2.msra.mxu0 0.0
    %632 = vmatprep.subr.mxu0 0.0
    %633 = vmatpush2.msra.mxu0 0.0
    %634 = vmatprep.subr.mxu0 0.0
    %635 = vmatpush2.msra.mxu0 0.0
    %636 = vmatprep.subr.mxu0 0.0
    %637 = vmatpush2.msra.mxu0 0.0
    %638 = vmatprep.subr.mxu0 0.0
    %639 = vmatpush2.msra.mxu0 0.0
    %640 = vmatprep.subr.mxu0 0.0
    %641 = vmatpush2.msra.mxu0 0.0
    %642 = vmatprep.subr.mxu0 0.0
    %643 = vmatpush2.msra.mxu0 0.0
    %644 = vmatprep.subr.mxu0 0.0
    %645 = vmatpush2.msra.mxu0 0.0
    %646 = vmatprep.subr.mxu0 0.0
    %647 = vmatpush2.msra.mxu0 0.0
    %648 = vmatprep.subr.mxu0 0.0
    %649 = vmatpush2.msra.mxu0 0.0
    %650 = vmatprep.subr.mxu0 0.0
    %651 = vmatpush2.msra.mxu0 0.0
    %652 = vmatprep.subr.mxu0 0.0
    %653 = vmatpush2.msra.mxu0 0.0
    %654 = vmatprep.subr.mxu0 0.0
    %655 = vmatpush2.msra.mxu0 0.0
    %656 = vmatprep.subr.mxu0 0.0
    %657 = vmatpush2.msra.mxu0 0.0
    %658 = vmatprep.mubr.f32.mxu0 0.0
    %659 = vmatmul.mubr.f32.gmra.mxu0 %v592
    %v660 = vpop.f32.mrf.mxu0
    %v661 = vadd.f32 %v588, %v660
    %v662 = vpop.f32.mrf.mxu0
    %663 = vdwg.mxu0
    %664 = vst [vmem:[#allocation8] sm:$0x3] %v661
    // Predicated region
    $region50: #{tpu_custom_call.1} parent=1 // pred_check
      _
    $region51: #{tpu_custom_call.1} parent=1 // pred_check_branch
      %666 = sbr.rel (0) target = $region53
    $region52: #{tpu_custom_call.1} parent=1 // pred_region
      %s668 = ssub.s32 32, 32
      %669 = vsyncadd [#allocation4], %s668
      %s671 = sshll.u32 [#allocation8], 4
      %s672 = int_to_ptr.vmem [resolvable:$true] %s671
      %674 = dma.vmem_to_hbm [thread:$0]  %s672, 32, %s9, [#allocation4]
    $region53: #{tpu_custom_call.1} parent=1 // pred_fallthru
      _
    // Predicated region
    $region54: #{tpu_custom_call.1} parent=1 // pred_check
      _
    $region55: #{tpu_custom_call.1} parent=1 // pred_check_branch
      %676 = sbr.rel (0) target = $region57
    $region56: #{tpu_custom_call.1} parent=1 // pred_region
      %677 = dma.done [#allocation4], 32
    $region57: #{tpu_custom_call.1} parent=1 // pred_fallthru
      _
    %678 = vsyncpa [#allocation3], 1
    %679 = vsyncpa [#allocation6], 1
    %680 = vsyncpa [#allocation4], 1

</llo_original>
